<compile_context>
chip_gen: v6e
topology: v6e:2x2x1
jax: 0.10.0
libtpu: 0.0.40
codegen_flags: <defaults>
</compile_context>

<pallas_src>
import functools

import numpy as np

import jax
import jax.numpy as jnp
from jax.experimental import pallas as pl
from jax.experimental.pallas import tpu as pltpu


# ----------------------------------------------------------------------------
# Small helpers
# ----------------------------------------------------------------------------
def _round_up(x, m):
    return (x + m - 1) // m * m


def _device_kind():
    try:
        return jax.devices()[0].device_kind.lower()
    except Exception:
        return ""


def _mxu_width():
    """256-wide MXU on v6e/v7x, 128 on v5e and older."""
    kind = _device_kind()
    return 256 if ("v6" in kind or "v7" in kind) else 128


def _vmem_cap_bytes():
    """Per-generation scoped-VMEM ceiling (leave headroom under physical)."""
    phys = None
    try:
        phys = int(pltpu.get_tpu_info().vmem_capacity_bytes)
    except Exception:
        phys = None
    if not phys:
        phys = (64 << 20) if "v7" in _device_kind() else (128 << 20)
    return max(int(phys * 3 // 4), 16 << 20)


def _pad_dim(d, mxu=128):
    """Lane-align d to 128; widen to the MXU width only when padding is cheap
    (<= 12.5% extra over the 128-aligned size)."""
    p = _round_up(d, 128)
    if mxu > 128 and p % mxu:
        p_wide = _round_up(d, mxu)
        if p_wide - p <= p // 8:
            p = p_wide
    return p


# ----------------------------------------------------------------------------
# Kernel: the whole MLP in one body.  All weights stay resident in VMEM.
# ----------------------------------------------------------------------------
def _fused_mlp_kernel(*refs, num_linear, compute_dtype):
    """refs = (x_ref, w_0, s_0, w_1, s_1, ..., w_{L-1}, s_{L-1}, o_ref).

    W' already contains the folded BN scale; shift' = b*scale + shift (f32).
    All layers but the last apply ReLU.  Dropout is identity (eval mode).
    """
    x_ref = refs[0]
    o_ref = refs[-1]
    p = refs[1:-1]

    h = x_ref[...]                                   # compute_dtype
    for i in range(num_linear):
        w = p[2 * i][...]                            # compute_dtype
        s = p[2 * i + 1][...]                        # f32 (folded bias/BN)
        # MXU matmul with f32 accumulation; bias/BN already folded into s.
        y = jnp.dot(h, w, preferred_element_type=jnp.float32)
        y = y + s                                    # f32 add on the VPU
        if i < num_linear - 1:
            y = jnp.maximum(y, 0.0)                  # ReLU (Dropout = identity)
            h = y.astype(compute_dtype)              # back to MXU operand dtype
        else:
            h = y
    o_ref[...] = h.astype(o_ref.dtype)


# ----------------------------------------------------------------------------
# Parameters: synthetic init (BN folded), then padding/cast for the kernel.
# ----------------------------------------------------------------------------
def init_mlp_params(key, input_dim, num_layers, hidden_dim, output_dim=2):
    """Deterministic synthetic parameters; BN folded into (W', shift'), f32."""
    eps = 1e-5

    def make_layer(key, in_dim, out_dim, with_bn):
        kw, kb, kg, kbeta, km, kv = jax.random.split(key, 6)
        # PyTorch Linear weight is (out, in); store transposed (in, out).
        bound = 1.0 / jnp.sqrt(in_dim)
        w = jax.random.uniform(kw, (in_dim, out_dim), jnp.float32, -bound, bound)
        b = jax.random.uniform(kb, (1, out_dim), jnp.float32, -bound, bound)
        if with_bn:
            gamma = 1.0 + 0.1 * jax.random.normal(kg, (1, out_dim), jnp.float32)
            beta = 0.1 * jax.random.normal(kbeta, (1, out_dim), jnp.float32)
            r_mean = 0.1 * jax.random.normal(km, (1, out_dim), jnp.float32)
            r_var = jnp.abs(1.0 + 0.1 * jax.random.normal(kv, (1, out_dim),
                                                          jnp.float32))
            scale = gamma / jnp.sqrt(r_var + eps)
            shift = beta - r_mean * scale
            # (xW + b)*scale + shift == x(W*scale) + (b*scale + shift)
            return (w * scale, b * scale + shift)
        return (w, b)

    keys = jax.random.split(key, num_layers + 1)
    params = [make_layer(keys[0], input_dim, hidden_dim, True)]
    for i in range(num_layers - 1):
        params.append(make_layer(keys[1 + i], hidden_dim, hidden_dim, True))
    params.append(make_layer(keys[num_layers], hidden_dim, output_dim, False))
    return params


def prepare_params(params, *, compute_dtype=jnp.bfloat16):
    """Pad every layer width (K and N) to lane/MXU multiples and cast.

    Padding is with zeros, so padded columns produce exactly 0 through
    add+ReLU and padded K rows contribute nothing: the chain stays exact
    (up to compute_dtype rounding) and the logical output is a slice.
    """
    mxu = _mxu_width()
    out_dim = params[-1][0].shape[1]
    flat = []
    for w, s in params:
        k, n = w.shape
        kp, np_ = _pad_dim(k, mxu), _pad_dim(n, mxu)
        if (kp, np_) != (k, n):
            w = jnp.pad(w, ((0, kp - k), (0, np_ - n)))
        if np_ != n:
            s = jnp.pad(s, ((0, 0), (0, np_ - n)))
        flat.append(w.astype(compute_dtype))   # fold BN in f32, THEN cast
        flat.append(s.astype(jnp.float32))     # bias/shift stays f32
    return {"flat": flat, "num_linear": len(params), "out_dim": out_dim,
            "compute_dtype": np.dtype(compute_dtype)}


# ----------------------------------------------------------------------------
# Wrapper
# ----------------------------------------------------------------------------
def mlp_forward(x, prepared, *, batch_tile=512):
    """Run the fused MLP.  `prepared` comes from prepare_params()."""
    flat = prepared["flat"]
    num_linear = prepared["num_linear"]
    out_dim = prepared["out_dim"]
    cdt = np.dtype(prepared["compute_dtype"])

    batch = x.shape[0]
    x2 = x.reshape(batch, -1).astype(jnp.float32)        # x.view(x.size(0), -1)
    in_dim = x2.shape[1]
    in_pad = flat[0].shape[0]                            # padded K of layer 0
    out_pad = flat[-2].shape[1]                          # padded N of last layer
    if in_pad < in_dim:
        raise ValueError("params were prepared for a smaller input_dim")

    # ---- batch tiling -------------------------------------------------------
    # Sublane-align per compute dtype; choose a tile COUNT first so the tail
    # padding stays small, and guarantee >=2 programs for non-tiny batches so
    # the "parallel" axis can shard across both TensorCores on v7x.
    sub = 8 if cdt.itemsize >= 4 else (16 if cdt.itemsize == 2 else 32)
    batch_pad0 = _round_up(batch, sub)
    tm_cap = max(sub, _round_up(batch_tile, sub))
    n_tiles = pl.cdiv(batch_pad0, tm_cap)
    if batch_pad0 >= 2 * sub:
        n_tiles = max(n_tiles, 2)
    tm = _round_up(pl.cdiv(batch_pad0, n_tiles), sub)
    batch_pad = n_tiles * tm

    if batch_pad != batch or in_pad != in_dim:
        x2 = jnp.pad(x2, ((0, batch_pad - batch), (0, in_pad - in_dim)))
    x2 = x2.astype(cdt)

    # ---- BlockSpecs ---------------------------------------------------------
    param_bytes = sum(int(a.size) * a.dtype.itemsize for a in flat)
    # Single-buffer the constant weight/shift blocks once they are big enough
    # for the extra buffer to matter (VMEM pressure at large hidden_dim).
    single_buffer = param_bytes > (8 << 20) and hasattr(pl, "Buffered")

    in_specs = [pl.BlockSpec((tm, in_pad), lambda i: (i, 0))]
    for a in flat:
        if single_buffer:
            spec = pl.BlockSpec(a.shape, lambda i: (0, 0),
                                pipeline_mode=pl.Buffered(1))
        else:
            spec = pl.BlockSpec(a.shape, lambda i: (0, 0))
        in_specs.append(spec)
    out_specs = pl.BlockSpec((tm, out_pad), lambda i: (i, 0))

    # ---- VMEM budget (real footprint + headroom, clamped per generation) ---
    x_tile_bytes = tm * in_pad * cdt.itemsize
    o_tile_bytes = tm * out_pad * cdt.itemsize
    io_bytes = 2 * (x_tile_bytes + o_tile_bytes)          # double-buffered I/O
    param_buf_bytes = param_bytes * (1 if single_buffer else 2)
    inter_bytes = sum(tm * flat[2 * i].shape[1] * 4 for i in range(num_linear))
    needed = param_buf_bytes + io_bytes + inter_bytes
    vmem_limit = int(min(needed + max(4 << 20, needed // 4), _vmem_cap_bytes()))

    kernel = functools.partial(_fused_mlp_kernel, num_linear=num_linear,
                               compute_dtype=cdt)

    out = pl.pallas_call(
        kernel,
        out_shape=jax.ShapeDtypeStruct((batch_pad, out_pad), cdt),
        grid=(n_tiles,),
        in_specs=in_specs,
        out_specs=out_specs,
        compiler_params=pltpu.CompilerParams(
            dimension_semantics=("parallel",),    # batch axis -> both TCs (v7x)
            vmem_limit_bytes=vmem_limit),
    )(x2, *flat)

    # Slice away batch/lane padding, restore f32 (PyTorch returns f32 here).
    return out[:batch, :out_dim].astype(jnp.float32)


# ----------------------------------------------------------------------------
if __name__ == "__main__":
    key = jax.random.PRNGKey(0)
    k_x, k_p = jax.random.split(key)

    # Small shapes consistent with the module's forward (flatten -> MLP).
    batch, channels, spatial = 2, 4, 16
    input_dim = channels * spatial * spatial      # 1024
    num_layers, hidden_dim, output_dim = 3, 32, 2

    x = jax.random.normal(k_x, (batch, channels, spatial, spatial),
                          dtype=jnp.float32)
    params = init_mlp_params(k_p, input_dim, num_layers, hidden_dim, output_dim)
    prepared = prepare_params(params)             # bf16 operands, f32 accum

    out = mlp_forward(x, prepared)
    jax.block_until_ready(out)
    assert out.shape == (batch, output_dim)
    print("KERNEL_OK")
</pallas_src>

<mosaic_0001>
module attributes {stable_mosaic.version = 11 : i64} {
  func.func @_fused_mlp_kernel(%arg0: i32, %arg1: memref<16x1024xbf16, #tpu.memory_space<vmem>>, %arg2: memref<1024x128xbf16, #tpu.memory_space<vmem>>, %arg3: memref<1x128xf32, #tpu.memory_space<vmem>>, %arg4: memref<128x128xbf16, #tpu.memory_space<vmem>>, %arg5: memref<1x128xf32, #tpu.memory_space<vmem>>, %arg6: memref<128x128xbf16, #tpu.memory_space<vmem>>, %arg7: memref<1x128xf32, #tpu.memory_space<vmem>>, %arg8: memref<128x128xbf16, #tpu.memory_space<vmem>>, %arg9: memref<1x128xf32, #tpu.memory_space<vmem>>, %arg10: memref<16x128xbf16, #tpu.memory_space<vmem>>) attributes {dimension_semantics = [#tpu.dimension_semantics<parallel>], iteration_bounds = array<i64: 1>, scalar_prefetch = 0 : i64, scratch_operands = 0 : i64, tpu.core_type = #tpu.core_type<tc>, window_params = [{transform_indices = @transform_0, window_bounds = array<i64: 16, 1024>}, {pipeline_mode = #tpu.pipeline_mode<synchronous>, transform_indices = @transform_1, window_bounds = array<i64: 1024, 128>}, {pipeline_mode = #tpu.pipeline_mode<synchronous>, transform_indices = @transform_2, window_bounds = array<i64: 1, 128>}, {pipeline_mode = #tpu.pipeline_mode<synchronous>, transform_indices = @transform_3, window_bounds = array<i64: 128, 128>}, {pipeline_mode = #tpu.pipeline_mode<synchronous>, transform_indices = @transform_4, window_bounds = array<i64: 1, 128>}, {pipeline_mode = #tpu.pipeline_mode<synchronous>, transform_indices = @transform_5, window_bounds = array<i64: 128, 128>}, {pipeline_mode = #tpu.pipeline_mode<synchronous>, transform_indices = @transform_6, window_bounds = array<i64: 1, 128>}, {pipeline_mode = #tpu.pipeline_mode<synchronous>, transform_indices = @transform_7, window_bounds = array<i64: 128, 128>}, {pipeline_mode = #tpu.pipeline_mode<synchronous>, transform_indices = @transform_8, window_bounds = array<i64: 1, 128>}, {transform_indices = @transform_9, window_bounds = array<i64: 16, 128>}]} {
    %c0 = arith.constant 0 : index
    %c0_0 = arith.constant 0 : index
    %0 = vector.load %arg1[%c0, %c0_0] : memref<16x1024xbf16, #tpu.memory_space<vmem>>, vector<16x1024xbf16>
    %c0_1 = arith.constant 0 : index
    %c0_2 = arith.constant 0 : index
    %1 = vector.load %arg2[%c0_1, %c0_2] : memref<1024x128xbf16, #tpu.memory_space<vmem>>, vector<1024x128xbf16>
    %c0_3 = arith.constant 0 : index
    %c0_4 = arith.constant 0 : index
    %2 = vector.load %arg3[%c0_3, %c0_4] : memref<1x128xf32, #tpu.memory_space<vmem>>, vector<1x128xf32>
    %cst = arith.constant dense<0.000000e+00> : vector<16x128xf32>
    %3 = tpu.matmul %0, %1, %cst {dimension_numbers = #tpu.dot_dimension_numbers<[1], [0], [0], [1], [0, 0, 1, 1], [], []>} : vector<16x1024xbf16>, vector<1024x128xbf16>, vector<16x128xf32> -> vector<16x128xf32>
    %4 = vector.broadcast %2 : vector<1x128xf32> to vector<16x128xf32>
    %5 = arith.addf %3, %4 : vector<16x128xf32>
    %cst_5 = arith.constant 0.000000e+00 : f32
    %6 = vector.broadcast %cst_5 : f32 to vector<16x128xf32>
    %7 = arith.maximumf %5, %6 : vector<16x128xf32>
    %8 = arith.truncf %7 : vector<16x128xf32> to vector<16x128xbf16>
    %c0_6 = arith.constant 0 : index
    %c0_7 = arith.constant 0 : index
    %9 = vector.load %arg4[%c0_6, %c0_7] : memref<128x128xbf16, #tpu.memory_space<vmem>>, vector<128x128xbf16>
    %c0_8 = arith.constant 0 : index
    %c0_9 = arith.constant 0 : index
    %10 = vector.load %arg5[%c0_8, %c0_9] : memref<1x128xf32, #tpu.memory_space<vmem>>, vector<1x128xf32>
    %cst_10 = arith.constant dense<0.000000e+00> : vector<16x128xf32>
    %11 = tpu.matmul %8, %9, %cst_10 {dimension_numbers = #tpu.dot_dimension_numbers<[1], [0], [0], [1], [0, 0, 1, 1], [], []>} : vector<16x128xbf16>, vector<128x128xbf16>, vector<16x128xf32> -> vector<16x128xf32>
    %12 = vector.broadcast %10 : vector<1x128xf32> to vector<16x128xf32>
    %13 = arith.addf %11, %12 : vector<16x128xf32>
    %cst_11 = arith.constant 0.000000e+00 : f32
    %14 = vector.broadcast %cst_11 : f32 to vector<16x128xf32>
    %15 = arith.maximumf %13, %14 : vector<16x128xf32>
    %16 = arith.truncf %15 : vector<16x128xf32> to vector<16x128xbf16>
    %c0_12 = arith.constant 0 : index
    %c0_13 = arith.constant 0 : index
    %17 = vector.load %arg6[%c0_12, %c0_13] : memref<128x128xbf16, #tpu.memory_space<vmem>>, vector<128x128xbf16>
    %c0_14 = arith.constant 0 : index
    %c0_15 = arith.constant 0 : index
    %18 = vector.load %arg7[%c0_14, %c0_15] : memref<1x128xf32, #tpu.memory_space<vmem>>, vector<1x128xf32>
    %cst_16 = arith.constant dense<0.000000e+00> : vector<16x128xf32>
    %19 = tpu.matmul %16, %17, %cst_16 {dimension_numbers = #tpu.dot_dimension_numbers<[1], [0], [0], [1], [0, 0, 1, 1], [], []>} : vector<16x128xbf16>, vector<128x128xbf16>, vector<16x128xf32> -> vector<16x128xf32>
    %20 = vector.broadcast %18 : vector<1x128xf32> to vector<16x128xf32>
    %21 = arith.addf %19, %20 : vector<16x128xf32>
    %cst_17 = arith.constant 0.000000e+00 : f32
    %22 = vector.broadcast %cst_17 : f32 to vector<16x128xf32>
    %23 = arith.maximumf %21, %22 : vector<16x128xf32>
    %24 = arith.truncf %23 : vector<16x128xf32> to vector<16x128xbf16>
    %c0_18 = arith.constant 0 : index
    %c0_19 = arith.constant 0 : index
    %25 = vector.load %arg8[%c0_18, %c0_19] : memref<128x128xbf16, #tpu.memory_space<vmem>>, vector<128x128xbf16>
    %c0_20 = arith.constant 0 : index
    %c0_21 = arith.constant 0 : index
    %26 = vector.load %arg9[%c0_20, %c0_21] : memref<1x128xf32, #tpu.memory_space<vmem>>, vector<1x128xf32>
    %cst_22 = arith.constant dense<0.000000e+00> : vector<16x128xf32>
    %27 = tpu.matmul %24, %25, %cst_22 {dimension_numbers = #tpu.dot_dimension_numbers<[1], [0], [0], [1], [0, 0, 1, 1], [], []>} : vector<16x128xbf16>, vector<128x128xbf16>, vector<16x128xf32> -> vector<16x128xf32>
    %28 = vector.broadcast %26 : vector<1x128xf32> to vector<16x128xf32>
    %29 = arith.addf %27, %28 : vector<16x128xf32>
    %30 = arith.truncf %29 : vector<16x128xf32> to vector<16x128xbf16>
    %c0_23 = arith.constant 0 : index
    %c0_24 = arith.constant 0 : index
    %31 = vector.load %arg10[%c0_23, %c0_24] : memref<16x128xbf16, #tpu.memory_space<vmem>>, vector<16x128xbf16>
    tpu.vector_store %arg10[%c0_23, %c0_24], %30 {strides = array<i32>} : memref<16x128xbf16, #tpu.memory_space<vmem>>, vector<16x128xbf16>,
    return
  }
  func.func @transform_0(%arg0: i32) -> (i32, i32) {
    %c0_i32 = arith.constant 0 : i32
    %c0_i32_0 = arith.constant 0 : i32
    return %arg0, %c0_i32 : i32, i32
  }
  func.func @transform_1(%arg0: i32) -> (i32, i32) {
    %c0_i32 = arith.constant 0 : i32
    %c0_i32_0 = arith.constant 0 : i32
    %c0_i32_1 = arith.constant 0 : i32
    return %c0_i32, %c0_i32_0 : i32, i32
  }
  func.func @transform_2(%arg0: i32) -> (i32, i32) {
    %c0_i32 = arith.constant 0 : i32
    %c0_i32_0 = arith.constant 0 : i32
    %c0_i32_1 = arith.constant 0 : i32
    return %c0_i32, %c0_i32_0 : i32, i32
  }
  func.func @transform_3(%arg0: i32) -> (i32, i32) {
    %c0_i32 = arith.constant 0 : i32
    %c0_i32_0 = arith.constant 0 : i32
    %c0_i32_1 = arith.constant 0 : i32
    return %c0_i32, %c0_i32_0 : i32, i32
  }
  func.func @transform_4(%arg0: i32) -> (i32, i32) {
    %c0_i32 = arith.constant 0 : i32
    %c0_i32_0 = arith.constant 0 : i32
    %c0_i32_1 = arith.constant 0 : i32
    return %c0_i32, %c0_i32_0 : i32, i32
  }
  func.func @transform_5(%arg0: i32) -> (i32, i32) {
    %c0_i32 = arith.constant 0 : i32
    %c0_i32_0 = arith.constant 0 : i32
    %c0_i32_1 = arith.constant 0 : i32
    return %c0_i32, %c0_i32_0 : i32, i32
  }
  func.func @transform_6(%arg0: i32) -> (i32, i32) {
    %c0_i32 = arith.constant 0 : i32
    %c0_i32_0 = arith.constant 0 : i32
    %c0_i32_1 = arith.constant 0 : i32
    return %c0_i32, %c0_i32_0 : i32, i32
  }
  func.func @transform_7(%arg0: i32) -> (i32, i32) {
    %c0_i32 = arith.constant 0 : i32
    %c0_i32_0 = arith.constant 0 : i32
    %c0_i32_1 = arith.constant 0 : i32
    return %c0_i32, %c0_i32_0 : i32, i32
  }
  func.func @transform_8(%arg0: i32) -> (i32, i32) {
    %c0_i32 = arith.constant 0 : i32
    %c0_i32_0 = arith.constant 0 : i32
    %c0_i32_1 = arith.constant 0 : i32
    return %c0_i32, %c0_i32_0 : i32, i32
  }
  func.func @transform_9(%arg0: i32) -> (i32, i32) {
    %c0_i32 = arith.constant 0 : i32
    %c0_i32_0 = arith.constant 0 : i32
    return %arg0, %c0_i32 : i32, i32
  }
}

</mosaic_0001>

<llo_original>
// kernel: tpu_custom_call.1
$region0: #{tpu_custom_call.1}
  #allocation0 [shape = 'u32[]', space=smem, size = 0x4, offset = 0x4, fixed_abs, tag = 'smem constant byte address 0x4 - core index']
  #allocation1 [shape = 'u32[144,128]{1,0:T(1,128)}', space=vmem, size = 0x12000, scoped, tag = 'internal scratch']
  %s0 = inlined_call_operand.hbm [shape: bf16[16,1024], index: 0, kind: input, shape index: {}]
  %s1 = inlined_call_operand.hbm [shape: bf16[1024,128], index: 1, kind: input, shape index: {}]
  %s2 = inlined_call_operand.vmem [shape: f32[1,128], index: 2, kind: input, shape index: {}]
  %s3 = inlined_call_operand.hbm [shape: bf16[128,128], index: 3, kind: input, shape index: {}]
  %s4 = inlined_call_operand.vmem [shape: f32[1,128], index: 4, kind: input, shape index: {}]
  %s5 = inlined_call_operand.hbm [shape: bf16[128,128], index: 5, kind: input, shape index: {}]
  %s6 = inlined_call_operand.vmem [shape: f32[1,128], index: 6, kind: input, shape index: {}]
  %s7 = inlined_call_operand.hbm [shape: bf16[128,128], index: 7, kind: input, shape index: {}]
  %s8 = inlined_call_operand.vmem [shape: f32[1,128], index: 8, kind: input, shape index: {}]
  %s9 = inlined_call_operand.hbm [shape: bf16[16,128], index: 9, kind: output, shape index: {}]
  %s10 = sld [smem:[#allocation0]]
  $region66: #{tpu_custom_call.1} parent=0
    _
  %s12 = ssub.s32 1, %s10
  %s13 = scalar_select 0, %s12, %s10
  $region1: #{tpu_custom_call.1} parent=0
    #allocation2 [shape = 'u8[32768]{0}', space=vmem, size = 0x8000, scoped, tag = 'input window, operand 0, single buffered']
    #allocation3 [shape = 's32[1]{0}', space=sflag, size = 0x4, scoped, tag = 'scoped memory for tpu_custom_call.1']
    #allocation4 [shape = 's32[1]{0}', space=sflag, size = 0x4, scoped, tag = 'scoped memory for tpu_custom_call.1']
    #allocation5 [shape = 'u8[262144]{0}', space=vmem, size = 0x40000, scoped, tag = 'input window, operand 1, single buffered']
    #allocation6 [shape = 's32[1]{0}', space=sflag, size = 0x4, scoped, tag = 'scoped memory for tpu_custom_call.1']
    #allocation7 [shape = 'u8[32768]{0}', space=vmem, size = 0x8000, scoped, tag = 'input window, operand 3, single buffered']
    #allocation8 [shape = 'u8[32768]{0}', space=vmem, size = 0x8000, scoped, tag = 'input window, operand 5, single buffered']
    #allocation9 [shape = 's32[1]{0}', space=sflag, size = 0x4, scoped, tag = 'scoped memory for tpu_custom_call.1']
    #allocation10 [shape = 'u8[32768]{0}', space=vmem, size = 0x8000, scoped, tag = 'input window, operand 7, single buffered']
    #allocation11 [shape = 'u8[4096]{0}', space=vmem, size = 0x1000, scoped, tag = 'output window, operand 0, single buffered']
    %14 = vsyncpa [#allocation3], 0
    %15 = vsyncpa [#allocation6], 0
    %16 = vsyncpa [#allocation9], 0
    %17 = vsyncpa [#allocation4], 0
    // Predicated region
    $region2: #{tpu_custom_call.1} parent=1 // pred_check
      _
    $region3: #{tpu_custom_call.1} parent=1 // pred_check_branch
      %19 = sbr.rel (0) target = $region5
    $region4: #{tpu_custom_call.1} parent=1 // pred_region
      %s21 = ssub.s32 1024, 1024
      %22 = vsyncadd [#allocation3], %s21
      %s23 = sshll.u32 [#allocation2], 4
      %s24 = int_to_ptr.vmem [resolvable:$true] %s23
      %29 = dma.hbm_to_vmem [thread:$0]  %s0, 1024, %s24, [#allocation3], 512, 512, 32
    $region5: #{tpu_custom_call.1} parent=1 // pred_fallthru
      _
    // Predicated region
    $region6: #{tpu_custom_call.1} parent=1 // pred_check
      _
    $region7: #{tpu_custom_call.1} parent=1 // pred_check_branch
      %31 = sbr.rel (0) target = $region9
    $region8: #{tpu_custom_call.1} parent=1 // pred_region
      %s33 = ssub.s32 8192, 8192
      %34 = vsyncadd [#allocation6], %s33
      %s35 = sshll.u32 [#allocation5], 4
      %s36 = int_to_ptr.vmem [resolvable:$true] %s35
      %41 = dma.hbm_to_vmem [thread:$0]  %s1, 8192, %s36, [#allocation6], 64, 64, 4
    $region9: #{tpu_custom_call.1} parent=1 // pred_fallthru
      _
    // Predicated region
    $region10: #{tpu_custom_call.1} parent=1 // pred_check
      _
    $region11: #{tpu_custom_call.1} parent=1 // pred_check_branch
      %43 = sbr.rel (0) target = $region13
    $region12: #{tpu_custom_call.1} parent=1 // pred_region
      _
    $region13: #{tpu_custom_call.1} parent=1 // pred_fallthru
      _
    // Predicated region
    $region14: #{tpu_custom_call.1} parent=1 // pred_check
      _
    $region15: #{tpu_custom_call.1} parent=1 // pred_check_branch
      %45 = sbr.rel (0) target = $region17
    $region16: #{tpu_custom_call.1} parent=1 // pred_region
      %s47 = ssub.s32 1024, 1024
      %48 = vsyncadd [#allocation6], %s47
      %s49 = sshll.u32 [#allocation7], 4
      %s50 = int_to_ptr.vmem [resolvable:$true] %s49
      %55 = dma.hbm_to_vmem [thread:$0]  %s3, 1024, %s50, [#allocation6], 64, 64, 4
    $region17: #{tpu_custom_call.1} parent=1 // pred_fallthru
      _
    // Predicated region
    $region18: #{tpu_custom_call.1} parent=1 // pred_check
      _
    $region19: #{tpu_custom_call.1} parent=1 // pred_check_branch
      %57 = sbr.rel (0) target = $region21
    $region20: #{tpu_custom_call.1} parent=1 // pred_region
      _
    $region21: #{tpu_custom_call.1} parent=1 // pred_fallthru
      _
    // Predicated region
    $region22: #{tpu_custom_call.1} parent=1 // pred_check
      _
    $region23: #{tpu_custom_call.1} parent=1 // pred_check_branch
      %59 = sbr.rel (0) target = $region25
    $region24: #{tpu_custom_call.1} parent=1 // pred_region
      %s61 = ssub.s32 1024, 1024
      %62 = vsyncadd [#allocation9], %s61
      %s63 = sshll.u32 [#allocation8], 4
      %s64 = int_to_ptr.vmem [resolvable:$true] %s63
      %69 = dma.hbm_to_vmem [thread:$0]  %s5, 1024, %s64, [#allocation9], 64, 64, 4
    $region25: #{tpu_custom_call.1} parent=1 // pred_fallthru
      _
    // Predicated region
    $region26: #{tpu_custom_call.1} parent=1 // pred_check
      _
    $region27: #{tpu_custom_call.1} parent=1 // pred_check_branch
      %71 = sbr.rel (0) target = $region29
    $region28: #{tpu_custom_call.1} parent=1 // pred_region
      _
    $region29: #{tpu_custom_call.1} parent=1 // pred_fallthru
      _
    // Predicated region
    $region30: #{tpu_custom_call.1} parent=1 // pred_check
      _
    $region31: #{tpu_custom_call.1} parent=1 // pred_check_branch
      %73 = sbr.rel (0) target = $region33
    $region32: #{tpu_custom_call.1} parent=1 // pred_region
      %s75 = ssub.s32 1024, 1024
      %76 = vsyncadd [#allocation9], %s75
      %s77 = sshll.u32 [#allocation10], 4
      %s78 = int_to_ptr.vmem [resolvable:$true] %s77
      %83 = dma.hbm_to_vmem [thread:$0]  %s7, 1024, %s78, [#allocation9], 64, 64, 4
    $region33: #{tpu_custom_call.1} parent=1 // pred_fallthru
      _
    // Predicated region
    $region34: #{tpu_custom_call.1} parent=1 // pred_check
      _
    $region35: #{tpu_custom_call.1} parent=1 // pred_check_branch
      %85 = sbr.rel (0) target = $region37
    $region36: #{tpu_custom_call.1} parent=1 // pred_region
      _
    $region37: #{tpu_custom_call.1} parent=1 // pred_fallthru
      _
    // Predicated region
    $region38: #{tpu_custom_call.1} parent=1 // pred_check
      _
    $region39: #{tpu_custom_call.1} parent=1 // pred_check_branch
      %87 = sbr.rel (0) target = $region41
    $region40: #{tpu_custom_call.1} parent=1 // pred_region
      %88 = dma.done [#allocation3], 1024
    $region41: #{tpu_custom_call.1} parent=1 // pred_fallthru
      _
    // Predicated region
    $region42: #{tpu_custom_call.1} parent=1 // pred_check
      _
    $region43: #{tpu_custom_call.1} parent=1 // pred_check_branch
      %90 = sbr.rel (0) target = $region45
    $region44: #{tpu_custom_call.1} parent=1 // pred_region
      %91 = dma.done [#allocation6], 8192
    $region45: #{tpu_custom_call.1} parent=1 // pred_fallthru
      _
    // Predicated region
    $region46: #{tpu_custom_call.1} parent=1 // pred_check
      _
    $region47: #{tpu_custom_call.1} parent=1 // pred_check_branch
      %93 = sbr.rel (0) target = $region49
    $region48: #{tpu_custom_call.1} parent=1 // pred_region
      %94 = dma.done [#allocation6], 1024
    $region49: #{tpu_custom_call.1} parent=1 // pred_fallthru
      _
    // Predicated region
    $region50: #{tpu_custom_call.1} parent=1 // pred_check
      _
    $region51: #{tpu_custom_call.1} parent=1 // pred_check_branch
      %96 = sbr.rel (0) target = $region53
    $region52: #{tpu_custom_call.1} parent=1 // pred_region
      %97 = dma.done [#allocation9], 1024
    $region53: #{tpu_custom_call.1} parent=1 // pred_fallthru
      _
    // Predicated region
    $region54: #{tpu_custom_call.1} parent=1 // pred_check
      _
    $region55: #{tpu_custom_call.1} parent=1 // pred_check_branch
      %99 = sbr.rel (0) target = $region57
    $region56: #{tpu_custom_call.1} parent=1 // pred_region
      %100 = dma.done [#allocation9], 1024
    $region57: #{tpu_custom_call.1} parent=1 // pred_fallthru
      _
    %v102 = vld [vmem:[#allocation2] sm:$0xff]
    %v103 = vld [vmem:[#allocation2 + $0x8] sm:$0xff]
    %v104 = vld [vmem:[#allocation2 + $0x10] sm:$0xff]
    %v105 = vld [vmem:[#allocation2 + $0x18] sm:$0xff]
    %v106 = vld [vmem:[#allocation2 + $0x20] sm:$0xff]
    %v107 = vld [vmem:[#allocation2 + $0x28] sm:$0xff]
    %v108 = vld [vmem:[#allocation2 + $0x30] sm:$0xff]
    %v109 = vld [vmem:[#allocation2 + $0x38] sm:$0xff]
    %v110 = vld [vmem:[#allocation5] sm:$0xf]
    %v111 = vld [vmem:[#allocation5 + $0x4] sm:$0xf]
    %v112 = vld [vmem:[#allocation5 + $0x8] sm:$0xf]
    %v113 = vld [vmem:[#allocation5 + $0xc] sm:$0xf]
    %v114 = vld [vmem:[#allocation5 + $0x10] sm:$0xf]
    %v115 = vld [vmem:[#allocation5 + $0x14] sm:$0xf]
    %v116 = vld [vmem:[#allocation5 + $0x18] sm:$0xf]
    %v117 = vld [vmem:[#allocation5 + $0x1c] sm:$0xf]
    %v118 = vld [vmem:[#allocation5 + $0x20] sm:$0xf]
    %v119 = vld [vmem:[#allocation5 + $0x24] sm:$0xf]
    %v120 = vld [vmem:[#allocation5 + $0x28] sm:$0xf]
    %v121 = vld [vmem:[#allocation5 + $0x2c] sm:$0xf]
    %v122 = vld [vmem:[#allocation5 + $0x30] sm:$0xf]
    %v123 = vld [vmem:[#allocation5 + $0x34] sm:$0xf]
    %v124 = vld [vmem:[#allocation5 + $0x38] sm:$0xf]
    %v125 = vld [vmem:[#allocation5 + $0x3c] sm:$0xf]
    %v126 = vld [vmem:[#allocation5 + $0x40] sm:$0xf]
    %v127 = vld [vmem:[#allocation5 + $0x44] sm:$0xf]
    %v128 = vld [vmem:[#allocation5 + $0x48] sm:$0xf]
    %v129 = vld [vmem:[#allocation5 + $0x4c] sm:$0xf]
    %v130 = vld [vmem:[#allocation5 + $0x50] sm:$0xf]
    %v131 = vld [vmem:[#allocation5 + $0x54] sm:$0xf]
    %v132 = vld [vmem:[#allocation5 + $0x58] sm:$0xf]
    %v133 = vld [vmem:[#allocation5 + $0x5c] sm:$0xf]
    %v134 = vld [vmem:[#allocation5 + $0x60] sm:$0xf]
    %v135 = vld [vmem:[#allocation5 + $0x64] sm:$0xf]
    %v136 = vld [vmem:[#allocation5 + $0x68] sm:$0xf]
    %v137 = vld [vmem:[#allocation5 + $0x6c] sm:$0xf]
    %v138 = vld [vmem:[#allocation5 + $0x70] sm:$0xf]
    %v139 = vld [vmem:[#allocation5 + $0x74] sm:$0xf]
    %v140 = vld [vmem:[#allocation5 + $0x78] sm:$0xf]
    %v141 = vld [vmem:[#allocation5 + $0x7c] sm:$0xf]
    %v142 = vld [vmem:[#allocation5 + $0x80] sm:$0xf]
    %v143 = vld [vmem:[#allocation5 + $0x84] sm:$0xf]
    %v144 = vld [vmem:[#allocation5 + $0x88] sm:$0xf]
    %v145 = vld [vmem:[#allocation5 + $0x8c] sm:$0xf]
    %v146 = vld [vmem:[#allocation5 + $0x90] sm:$0xf]
    %v147 = vld [vmem:[#allocation5 + $0x94] sm:$0xf]
    %v148 = vld [vmem:[#allocation5 + $0x98] sm:$0xf]
    %v149 = vld [vmem:[#allocation5 + $0x9c] sm:$0xf]
    %v150 = vld [vmem:[#allocation5 + $0xa0] sm:$0xf]
    %v151 = vld [vmem:[#allocation5 + $0xa4] sm:$0xf]
    %v152 = vld [vmem:[#allocation5 + $0xa8] sm:$0xf]
    %v153 = vld [vmem:[#allocation5 + $0xac] sm:$0xf]
    %v154 = vld [vmem:[#allocation5 + $0xb0] sm:$0xf]
    %v155 = vld [vmem:[#allocation5 + $0xb4] sm:$0xf]
    %v156 = vld [vmem:[#allocation5 + $0xb8] sm:$0xf]
    %v157 = vld [vmem:[#allocation5 + $0xbc] sm:$0xf]
    %v158 = vld [vmem:[#allocation5 + $0xc0] sm:$0xf]
    %v159 = vld [vmem:[#allocation5 + $0xc4] sm:$0xf]
    %v160 = vld [vmem:[#allocation5 + $0xc8] sm:$0xf]
    %v161 = vld [vmem:[#allocation5 + $0xcc] sm:$0xf]
    %v162 = vld [vmem:[#allocation5 + $0xd0] sm:$0xf]
    %v163 = vld [vmem:[#allocation5 + $0xd4] sm:$0xf]
    %v164 = vld [vmem:[#allocation5 + $0xd8] sm:$0xf]
    %v165 = vld [vmem:[#allocation5 + $0xdc] sm:$0xf]
    %v166 = vld [vmem:[#allocation5 + $0xe0] sm:$0xf]
    %v167 = vld [vmem:[#allocation5 + $0xe4] sm:$0xf]
    %v168 = vld [vmem:[#allocation5 + $0xe8] sm:$0xf]
    %v169 = vld [vmem:[#allocation5 + $0xec] sm:$0xf]
    %v170 = vld [vmem:[#allocation5 + $0xf0] sm:$0xf]
    %v171 = vld [vmem:[#allocation5 + $0xf4] sm:$0xf]
    %v172 = vld [vmem:[#allocation5 + $0xf8] sm:$0xf]
    %v173 = vld [vmem:[#allocation5 + $0xfc] sm:$0xf]
    %v174 = vld [vmem:[#allocation5 + $0x100] sm:$0xf]
    %v175 = vld [vmem:[#allocation5 + $0x104] sm:$0xf]
    %v176 = vld [vmem:[#allocation5 + $0x108] sm:$0xf]
    %v177 = vld [vmem:[#allocation5 + $0x10c] sm:$0xf]
    %v178 = vld [vmem:[#allocation5 + $0x110] sm:$0xf]
    %v179 = vld [vmem:[#allocation5 + $0x114] sm:$0xf]
    %v180 = vld [vmem:[#allocation5 + $0x118] sm:$0xf]
    %v181 = vld [vmem:[#allocation5 + $0x11c] sm:$0xf]
    %v182 = vld [vmem:[#allocation5 + $0x120] sm:$0xf]
    %v183 = vld [vmem:[#allocation5 + $0x124] sm:$0xf]
    %v184 = vld [vmem:[#allocation5 + $0x128] sm:$0xf]
    %v185 = vld [vmem:[#allocation5 + $0x12c] sm:$0xf]
    %v186 = vld [vmem:[#allocation5 + $0x130] sm:$0xf]
    %v187 = vld [vmem:[#allocation5 + $0x134] sm:$0xf]
    %v188 = vld [vmem:[#allocation5 + $0x138] sm:$0xf]
    %v189 = vld [vmem:[#allocation5 + $0x13c] sm:$0xf]
    %v190 = vld [vmem:[#allocation5 + $0x140] sm:$0xf]
    %v191 = vld [vmem:[#allocation5 + $0x144] sm:$0xf]
    %v192 = vld [vmem:[#allocation5 + $0x148] sm:$0xf]
    %v193 = vld [vmem:[#allocation5 + $0x14c] sm:$0xf]
    %v194 = vld [vmem:[#allocation5 + $0x150] sm:$0xf]
    %v195 = vld [vmem:[#allocation5 + $0x154] sm:$0xf]
    %v196 = vld [vmem:[#allocation5 + $0x158] sm:$0xf]
    %v197 = vld [vmem:[#allocation5 + $0x15c] sm:$0xf]
    %v198 = vld [vmem:[#allocation5 + $0x160] sm:$0xf]
    %v199 = vld [vmem:[#allocation5 + $0x164] sm:$0xf]
    %v200 = vld [vmem:[#allocation5 + $0x168] sm:$0xf]
    %v201 = vld [vmem:[#allocation5 + $0x16c] sm:$0xf]
    %v202 = vld [vmem:[#allocation5 + $0x170] sm:$0xf]
    %v203 = vld [vmem:[#allocation5 + $0x174] sm:$0xf]
    %v204 = vld [vmem:[#allocation5 + $0x178] sm:$0xf]
    %v205 = vld [vmem:[#allocation5 + $0x17c] sm:$0xf]
    %v206 = vld [vmem:[#allocation5 + $0x180] sm:$0xf]
    %v207 = vld [vmem:[#allocation5 + $0x184] sm:$0xf]
    %v208 = vld [vmem:[#allocation5 + $0x188] sm:$0xf]
    %v209 = vld [vmem:[#allocation5 + $0x18c] sm:$0xf]
    %v210 = vld [vmem:[#allocation5 + $0x190] sm:$0xf]
    %v211 = vld [vmem:[#allocation5 + $0x194] sm:$0xf]
    %v212 = vld [vmem:[#allocation5 + $0x198] sm:$0xf]
    %v213 = vld [vmem:[#allocation5 + $0x19c] sm:$0xf]
    %v214 = vld [vmem:[#allocation5 + $0x1a0] sm:$0xf]
    %v215 = vld [vmem:[#allocation5 + $0x1a4] sm:$0xf]
    %v216 = vld [vmem:[#allocation5 + $0x1a8] sm:$0xf]
    %v217 = vld [vmem:[#allocation5 + $0x1ac] sm:$0xf]
    %v218 = vld [vmem:[#allocation5 + $0x1b0] sm:$0xf]
    %v219 = vld [vmem:[#allocation5 + $0x1b4] sm:$0xf]
    %v220 = vld [vmem:[#allocation5 + $0x1b8] sm:$0xf]
    %v221 = vld [vmem:[#allocation5 + $0x1bc] sm:$0xf]
    %v222 = vld [vmem:[#allocation5 + $0x1c0] sm:$0xf]
    %v223 = vld [vmem:[#allocation5 + $0x1c4] sm:$0xf]
    %v224 = vld [vmem:[#allocation5 + $0x1c8] sm:$0xf]
    %v225 = vld [vmem:[#allocation5 + $0x1cc] sm:$0xf]
    %v226 = vld [vmem:[#allocation5 + $0x1d0] sm:$0xf]
    %v227 = vld [vmem:[#allocation5 + $0x1d4] sm:$0xf]
    %v228 = vld [vmem:[#allocation5 + $0x1d8] sm:$0xf]
    %v229 = vld [vmem:[#allocation5 + $0x1dc] sm:$0xf]
    %v230 = vld [vmem:[#allocation5 + $0x1e0] sm:$0xf]
    %v231 = vld [vmem:[#allocation5 + $0x1e4] sm:$0xf]
    %v232 = vld [vmem:[#allocation5 + $0x1e8] sm:$0xf]
    %v233 = vld [vmem:[#allocation5 + $0x1ec] sm:$0xf]
    %v234 = vld [vmem:[#allocation5 + $0x1f0] sm:$0xf]
    %v235 = vld [vmem:[#allocation5 + $0x1f4] sm:$0xf]
    %v236 = vld [vmem:[#allocation5 + $0x1f8] sm:$0xf]
    %v237 = vld [vmem:[#allocation5 + $0x1fc] sm:$0xf]
    %v238 = vld [vmem:[%s2] sm:$0x1]
    %v240 = vlaneseq
    %v241 = vshrl.u32 %v240, 7
    %v242 = vsub.s32 0, %v241
    %v243 = vrot.slane %v238, %v242
    %v253 = vunpack.c.l.b16 %v102
    %v254 = vunpack.c.h.b16 %v102
    %v255 = vunpack.c.l.b16 %v103
    %v256 = vunpack.c.h.b16 %v103
    %v257 = vunpack.c.l.b16 %v104
    %v258 = vunpack.c.h.b16 %v104
    %v259 = vunpack.c.l.b16 %v105
    %v260 = vunpack.c.h.b16 %v105
    %v261 = vunpack.c.l.b16 %v106
    %v262 = vunpack.c.h.b16 %v106
    %v263 = vunpack.c.l.b16 %v107
    %v264 = vunpack.c.h.b16 %v107
    %v265 = vunpack.c.l.b16 %v108
    %v266 = vunpack.c.h.b16 %v108
    %v267 = vunpack.c.l.b16 %v109
    %v268 = vunpack.c.h.b16 %v109
    %v269 = vpack.c.b16 %v261, %v253
    %v270 = vpack.c.b16 %v262, %v254
    %v271 = vpack.c.b16 %v263, %v255
    %v272 = vpack.c.b16 %v264, %v256
    %v273 = vpack.c.b16 %v265, %v257
    %v274 = vpack.c.b16 %v266, %v258
    %v275 = vpack.c.b16 %v267, %v259
    %v276 = vpack.c.b16 %v268, %v260
    %v413 = vunpack.c.l.b16 %v110
    %v414 = vunpack.c.l.b16 %v111
    %v415 = vunpack.c.l.b16 %v112
    %v416 = vunpack.c.l.b16 %v113
    %v417 = vunpack.c.l.b16 %v114
    %v418 = vunpack.c.l.b16 %v115
    %v419 = vunpack.c.l.b16 %v116
    %v420 = vunpack.c.l.b16 %v117
    %v421 = vunpack.c.l.b16 %v118
    %v422 = vunpack.c.l.b16 %v119
    %v423 = vunpack.c.l.b16 %v120
    %v424 = vunpack.c.l.b16 %v121
    %v425 = vunpack.c.l.b16 %v122
    %v426 = vunpack.c.l.b16 %v123
    %v427 = vunpack.c.l.b16 %v124
    %v428 = vunpack.c.l.b16 %v125
    %v429 = vunpack.c.l.b16 %v126
    %v430 = vunpack.c.l.b16 %v127
    %v431 = vunpack.c.l.b16 %v128
    %v432 = vunpack.c.l.b16 %v129
    %v433 = vunpack.c.l.b16 %v130
    %v434 = vunpack.c.l.b16 %v131
    %v435 = vunpack.c.l.b16 %v132
    %v436 = vunpack.c.l.b16 %v133
    %v437 = vunpack.c.l.b16 %v134
    %v438 = vunpack.c.l.b16 %v135
    %v439 = vunpack.c.l.b16 %v136
    %v440 = vunpack.c.l.b16 %v137
    %v441 = vunpack.c.l.b16 %v138
    %v442 = vunpack.c.l.b16 %v139
    %v443 = vunpack.c.l.b16 %v140
    %v444 = vunpack.c.l.b16 %v141
    %v445 = vunpack.c.l.b16 %v142
    %v446 = vunpack.c.l.b16 %v143
    %v447 = vunpack.c.l.b16 %v144
    %v448 = vunpack.c.l.b16 %v145
    %v449 = vunpack.c.l.b16 %v146
    %v450 = vunpack.c.l.b16 %v147
    %v451 = vunpack.c.l.b16 %v148
    %v452 = vunpack.c.l.b16 %v149
    %v453 = vunpack.c.l.b16 %v150
    %v454 = vunpack.c.l.b16 %v151
    %v455 = vunpack.c.l.b16 %v152
    %v456 = vunpack.c.l.b16 %v153
    %v457 = vunpack.c.l.b16 %v154
    %v458 = vunpack.c.l.b16 %v155
    %v459 = vunpack.c.l.b16 %v156
    %v460 = vunpack.c.l.b16 %v157
    %v461 = vunpack.c.l.b16 %v158
    %v462 = vunpack.c.l.b16 %v159
    %v463 = vunpack.c.l.b16 %v160
    %v464 = vunpack.c.l.b16 %v161
    %v465 = vunpack.c.l.b16 %v162
    %v466 = vunpack.c.l.b16 %v163
    %v467 = vunpack.c.l.b16 %v164
    %v468 = vunpack.c.l.b16 %v165
    %v469 = vunpack.c.l.b16 %v166
    %v470 = vunpack.c.l.b16 %v167
    %v471 = vunpack.c.l.b16 %v168
    %v472 = vunpack.c.l.b16 %v169
    %v473 = vunpack.c.l.b16 %v170
    %v474 = vunpack.c.l.b16 %v171
    %v475 = vunpack.c.l.b16 %v172
    %v476 = vunpack.c.l.b16 %v173
    %v477 = vunpack.c.l.b16 %v174
    %v478 = vunpack.c.l.b16 %v175
    %v479 = vunpack.c.l.b16 %v176
    %v480 = vunpack.c.l.b16 %v177
    %v481 = vunpack.c.l.b16 %v178
    %v482 = vunpack.c.l.b16 %v179
    %v483 = vunpack.c.l.b16 %v180
    %v484 = vunpack.c.l.b16 %v181
    %v485 = vunpack.c.l.b16 %v182
    %v486 = vunpack.c.l.b16 %v183
    %v487 = vunpack.c.l.b16 %v184
    %v488 = vunpack.c.l.b16 %v185
    %v489 = vunpack.c.l.b16 %v186
    %v490 = vunpack.c.l.b16 %v187
    %v491 = vunpack.c.l.b16 %v188
    %v492 = vunpack.c.l.b16 %v189
    %v493 = vunpack.c.l.b16 %v190
    %v494 = vunpack.c.l.b16 %v191
    %v495 = vunpack.c.l.b16 %v192
    %v496 = vunpack.c.l.b16 %v193
    %v497 = vunpack.c.l.b16 %v194
    %v498 = vunpack.c.l.b16 %v195
    %v499 = vunpack.c.l.b16 %v196
    %v500 = vunpack.c.l.b16 %v197
    %v501 = vunpack.c.l.b16 %v198
    %v502 = vunpack.c.l.b16 %v199
    %v503 = vunpack.c.l.b16 %v200
    %v504 = vunpack.c.l.b16 %v201
    %v505 = vunpack.c.l.b16 %v202
    %v506 = vunpack.c.l.b16 %v203
    %v507 = vunpack.c.l.b16 %v204
    %v508 = vunpack.c.l.b16 %v205
    %v509 = vunpack.c.l.b16 %v206
    %v510 = vunpack.c.l.b16 %v207
    %v511 = vunpack.c.l.b16 %v208
    %v512 = vunpack.c.l.b16 %v209
    %v513 = vunpack.c.l.b16 %v210
    %v514 = vunpack.c.l.b16 %v211
    %v515 = vunpack.c.l.b16 %v212
    %v516 = vunpack.c.l.b16 %v213
    %v517 = vunpack.c.l.b16 %v214
    %v518 = vunpack.c.l.b16 %v215
    %v519 = vunpack.c.l.b16 %v216
    %v520 = vunpack.c.l.b16 %v217
    %v521 = vunpack.c.l.b16 %v218
    %v522 = vunpack.c.l.b16 %v219
    %v523 = vunpack.c.l.b16 %v220
    %v524 = vunpack.c.l.b16 %v221
    %v525 = vunpack.c.l.b16 %v222
    %v526 = vunpack.c.l.b16 %v223
    %v527 = vunpack.c.l.b16 %v224
    %v528 = vunpack.c.l.b16 %v225
    %v529 = vunpack.c.l.b16 %v226
    %v530 = vunpack.c.l.b16 %v227
    %v531 = vunpack.c.l.b16 %v228
    %v532 = vunpack.c.l.b16 %v229
    %v533 = vunpack.c.l.b16 %v230
    %v534 = vunpack.c.l.b16 %v231
    %v535 = vunpack.c.l.b16 %v232
    %v536 = vunpack.c.l.b16 %v233
    %v537 = vunpack.c.l.b16 %v234
    %v538 = vunpack.c.l.b16 %v235
    %v539 = vunpack.c.l.b16 %v236
    %v540 = vunpack.c.l.b16 %v237
    %v541 = vpack.c.b16 %v414, %v413
    %v542 = vpack.c.b16 %v416, %v415
    %v543 = vpack.c.b16 %v418, %v417
    %v544 = vpack.c.b16 %v420, %v419
    %v545 = vpack.c.b16 %v422, %v421
    %v546 = vpack.c.b16 %v424, %v423
    %v547 = vpack.c.b16 %v426, %v425
    %v548 = vpack.c.b16 %v428, %v427
    %v549 = vpack.c.b16 %v430, %v429
    %v550 = vpack.c.b16 %v432, %v431
    %v551 = vpack.c.b16 %v434, %v433
    %v552 = vpack.c.b16 %v436, %v435
    %v553 = vpack.c.b16 %v438, %v437
    %v554 = vpack.c.b16 %v440, %v439
    %v555 = vpack.c.b16 %v442, %v441
    %v556 = vpack.c.b16 %v444, %v443
    %v557 = vpack.c.b16 %v446, %v445
    %v558 = vpack.c.b16 %v448, %v447
    %v559 = vpack.c.b16 %v450, %v449
    %v560 = vpack.c.b16 %v452, %v451
    %v561 = vpack.c.b16 %v454, %v453
    %v562 = vpack.c.b16 %v456, %v455
    %v563 = vpack.c.b16 %v458, %v457
    %v564 = vpack.c.b16 %v460, %v459
    %v565 = vpack.c.b16 %v462, %v461
    %v566 = vpack.c.b16 %v464, %v463
    %v567 = vpack.c.b16 %v466, %v465
    %v568 = vpack.c.b16 %v468, %v467
    %v569 = vpack.c.b16 %v470, %v469
    %v570 = vpack.c.b16 %v472, %v471
    %v571 = vpack.c.b16 %v474, %v473
    %v572 = vpack.c.b16 %v476, %v475
    %v573 = vpack.c.b16 %v478, %v477
    %v574 = vpack.c.b16 %v480, %v479
    %v575 = vpack.c.b16 %v482, %v481
    %v576 = vpack.c.b16 %v484, %v483
    %v577 = vpack.c.b16 %v486, %v485
    %v578 = vpack.c.b16 %v488, %v487
    %v579 = vpack.c.b16 %v490, %v489
    %v580 = vpack.c.b16 %v492, %v491
    %v581 = vpack.c.b16 %v494, %v493
    %v582 = vpack.c.b16 %v496, %v495
    %v583 = vpack.c.b16 %v498, %v497
    %v584 = vpack.c.b16 %v500, %v499
    %v585 = vpack.c.b16 %v502, %v501
    %v586 = vpack.c.b16 %v504, %v503
    %v587 = vpack.c.b16 %v506, %v505
    %v588 = vpack.c.b16 %v508, %v507
    %v589 = vpack.c.b16 %v510, %v509
    %v590 = vpack.c.b16 %v512, %v511
    %v591 = vpack.c.b16 %v514, %v513
    %v592 = vpack.c.b16 %v516, %v515
    %v593 = vpack.c.b16 %v518, %v517
    %v594 = vpack.c.b16 %v520, %v519
    %v595 = vpack.c.b16 %v522, %v521
    %v596 = vpack.c.b16 %v524, %v523
    %v597 = vpack.c.b16 %v526, %v525
    %v598 = vpack.c.b16 %v528, %v527
    %v599 = vpack.c.b16 %v530, %v529
    %v600 = vpack.c.b16 %v532, %v531
    %v601 = vpack.c.b16 %v534, %v533
    %v602 = vpack.c.b16 %v536, %v535
    %v603 = vpack.c.b16 %v538, %v537
    %v604 = vpack.c.b16 %v540, %v539
    %669 = vmatprep.subr.bf16.mxu0 0
    %670 = vmatpush1.bf16.msra.mxu0 %v548
    %671 = vmatprep.subr.bf16.mxu0 0
    %672 = vmatpush1.bf16.msra.mxu0 %v547
    %673 = vmatprep.subr.bf16.mxu0 0
    %674 = vmatpush1.bf16.msra.mxu0 %v546
    %675 = vmatprep.subr.bf16.mxu0 0
    %676 = vmatpush1.bf16.msra.mxu0 %v545
    %677 = vmatprep.subr.bf16.mxu0 0
    %678 = vmatpush1.bf16.msra.mxu0 %v544
    %679 = vmatprep.subr.bf16.mxu0 0
    %680 = vmatpush1.bf16.msra.mxu0 %v543
    %681 = vmatprep.subr.bf16.mxu0 0
    %682 = vmatpush1.bf16.msra.mxu0 %v542
    %683 = vmatprep.subr.bf16.mxu0 0
    %684 = vmatpush1.bf16.msra.mxu0 %v541
    %685 = vmatprep.subr.bf16.mxu0 0
    %686 = vmatpush2.bf16.msra.mxu0 %v556
    %687 = vmatprep.subr.bf16.mxu0 0
    %688 = vmatpush2.bf16.msra.mxu0 %v555
    %689 = vmatprep.subr.bf16.mxu0 0
    %690 = vmatpush2.bf16.msra.mxu0 %v554
    %691 = vmatprep.subr.bf16.mxu0 0
    %692 = vmatpush2.bf16.msra.mxu0 %v553
    %693 = vmatprep.subr.bf16.mxu0 0
    %694 = vmatpush2.bf16.msra.mxu0 %v552
    %695 = vmatprep.subr.bf16.mxu0 0
    %696 = vmatpush2.bf16.msra.mxu0 %v551
    %697 = vmatprep.subr.bf16.mxu0 0
    %698 = vmatpush2.bf16.msra.mxu0 %v550
    %699 = vmatprep.subr.bf16.mxu0 0
    %700 = vmatpush2.bf16.msra.mxu0 %v549
    %701 = vmatprep.mubr.bf16.mxu0 %v270
    %702 = vmatmul.mubr.bf16.gmra.mxu0 %v269
    %v703 = vpop.f32.mrf.mxu0
    %v704 = vadd.f32 %v243, %v703
    %v705 = vpop.f32.mrf.mxu0
    %v706 = vpop.f32.mrf.mxu0
    %v707 = vadd.f32 %v243, %v706
    %v708 = vpop.f32.mrf.mxu0
    %709 = vdwg.mxu0
    %710 = vmatprep.subr.bf16.mxu0 0
    %711 = vmatpush1.bf16.msra.mxu0 %v564
    %712 = vmatprep.subr.bf16.mxu0 0
    %713 = vmatpush1.bf16.msra.mxu0 %v563
    %714 = vmatprep.subr.bf16.mxu0 0
    %715 = vmatpush1.bf16.msra.mxu0 %v562
    %716 = vmatprep.subr.bf16.mxu0 0
    %717 = vmatpush1.bf16.msra.mxu0 %v561
    %718 = vmatprep.subr.bf16.mxu0 0
    %719 = vmatpush1.bf16.msra.mxu0 %v560
    %720 = vmatprep.subr.bf16.mxu0 0
    %721 = vmatpush1.bf16.msra.mxu0 %v559
    %722 = vmatprep.subr.bf16.mxu0 0
    %723 = vmatpush1.bf16.msra.mxu0 %v558
    %724 = vmatprep.subr.bf16.mxu0 0
    %725 = vmatpush1.bf16.msra.mxu0 %v557
    %726 = vmatprep.subr.bf16.mxu0 0
    %727 = vmatpush2.bf16.msra.mxu0 %v572
    %728 = vmatprep.subr.bf16.mxu0 0
    %729 = vmatpush2.bf16.msra.mxu0 %v571
    %730 = vmatprep.subr.bf16.mxu0 0
    %731 = vmatpush2.bf16.msra.mxu0 %v570
    %732 = vmatprep.subr.bf16.mxu0 0
    %733 = vmatpush2.bf16.msra.mxu0 %v569
    %734 = vmatprep.subr.bf16.mxu0 0
    %735 = vmatpush2.bf16.msra.mxu0 %v568
    %736 = vmatprep.subr.bf16.mxu0 0
    %737 = vmatpush2.bf16.msra.mxu0 %v567
    %738 = vmatprep.subr.bf16.mxu0 0
    %739 = vmatpush2.bf16.msra.mxu0 %v566
    %740 = vmatprep.subr.bf16.mxu0 0
    %741 = vmatpush2.bf16.msra.mxu0 %v565
    %742 = vmatprep.mubr.bf16.mxu0 %v272
    %743 = vmatmul.mubr.bf16.gmra.mxu0 %v271
    %v744 = vpop.f32.mrf.mxu0
    %v745 = vadd.f32 %v704, %v744
    %v746 = vpop.f32.mrf.mxu0
    %v747 = vpop.f32.mrf.mxu0
    %v748 = vadd.f32 %v707, %v747
    %v749 = vpop.f32.mrf.mxu0
    %750 = vdwg.mxu0
    %751 = vmatprep.subr.bf16.mxu0 0
    %752 = vmatpush1.bf16.msra.mxu0 %v580
    %753 = vmatprep.subr.bf16.mxu0 0
    %754 = vmatpush1.bf16.msra.mxu0 %v579
    %755 = vmatprep.subr.bf16.mxu0 0
    %756 = vmatpush1.bf16.msra.mxu0 %v578
    %757 = vmatprep.subr.bf16.mxu0 0
    %758 = vmatpush1.bf16.msra.mxu0 %v577
    %759 = vmatprep.subr.bf16.mxu0 0
    %760 = vmatpush1.bf16.msra.mxu0 %v576
    %761 = vmatprep.subr.bf16.mxu0 0
    %762 = vmatpush1.bf16.msra.mxu0 %v575
    %763 = vmatprep.subr.bf16.mxu0 0
    %764 = vmatpush1.bf16.msra.mxu0 %v574
    %765 = vmatprep.subr.bf16.mxu0 0
    %766 = vmatpush1.bf16.msra.mxu0 %v573
    %767 = vmatprep.subr.bf16.mxu0 0
    %768 = vmatpush2.bf16.msra.mxu0 %v588
    %769 = vmatprep.subr.bf16.mxu0 0
    %770 = vmatpush2.bf16.msra.mxu0 %v587
    %771 = vmatprep.subr.bf16.mxu0 0
    %772 = vmatpush2.bf16.msra.mxu0 %v586
    %773 = vmatprep.subr.bf16.mxu0 0
    %774 = vmatpush2.bf16.msra.mxu0 %v585
    %775 = vmatprep.subr.bf16.mxu0 0
    %776 = vmatpush2.bf16.msra.mxu0 %v584
    %777 = vmatprep.subr.bf16.mxu0 0
    %778 = vmatpush2.bf16.msra.mxu0 %v583
    %779 = vmatprep.subr.bf16.mxu0 0
    %780 = vmatpush2.bf16.msra.mxu0 %v582
    %781 = vmatprep.subr.bf16.mxu0 0
    %782 = vmatpush2.bf16.msra.mxu0 %v581
    %783 = vmatprep.mubr.bf16.mxu0 %v274
    %784 = vmatmul.mubr.bf16.gmra.mxu0 %v273
    %v785 = vpop.f32.mrf.mxu0
    %v786 = vadd.f32 %v745, %v785
    %v787 = vpop.f32.mrf.mxu0
    %v788 = vpop.f32.mrf.mxu0
    %v789 = vadd.f32 %v748, %v788
    %v790 = vpop.f32.mrf.mxu0
    %791 = vdwg.mxu0
    %792 = vmatprep.subr.bf16.mxu0 0
    %793 = vmatpush1.bf16.msra.mxu0 %v596
    %794 = vmatprep.subr.bf16.mxu0 0
    %795 = vmatpush1.bf16.msra.mxu0 %v595
    %796 = vmatprep.subr.bf16.mxu0 0
    %797 = vmatpush1.bf16.msra.mxu0 %v594
    %798 = vmatprep.subr.bf16.mxu0 0
    %799 = vmatpush1.bf16.msra.mxu0 %v593
    %800 = vmatprep.subr.bf16.mxu0 0
    %801 = vmatpush1.bf16.msra.mxu0 %v592
    %802 = vmatprep.subr.bf16.mxu0 0
    %803 = vmatpush1.bf16.msra.mxu0 %v591
    %804 = vmatprep.subr.bf16.mxu0 0
    %805 = vmatpush1.bf16.msra.mxu0 %v590
    %806 = vmatprep.subr.bf16.mxu0 0
    %807 = vmatpush1.bf16.msra.mxu0 %v589
    %808 = vmatprep.subr.bf16.mxu0 0
    %809 = vmatpush2.bf16.msra.mxu0 %v604
    %810 = vmatprep.subr.bf16.mxu0 0
    %811 = vmatpush2.bf16.msra.mxu0 %v603
    %812 = vmatprep.subr.bf16.mxu0 0
    %813 = vmatpush2.bf16.msra.mxu0 %v602
    %814 = vmatprep.subr.bf16.mxu0 0
    %815 = vmatpush2.bf16.msra.mxu0 %v601
    %816 = vmatprep.subr.bf16.mxu0 0
    %817 = vmatpush2.bf16.msra.mxu0 %v600
    %818 = vmatprep.subr.bf16.mxu0 0
    %819 = vmatpush2.bf16.msra.mxu0 %v599
    %820 = vmatprep.subr.bf16.mxu0 0
    %821 = vmatpush2.bf16.msra.mxu0 %v598
    %822 = vmatprep.subr.bf16.mxu0 0
    %823 = vmatpush2.bf16.msra.mxu0 %v597
    %824 = vmatprep.mubr.bf16.mxu0 %v276
    %825 = vmatmul.mubr.bf16.gmra.mxu0 %v275
    %v826 = vpop.f32.mrf.mxu0
    %v827 = vadd.f32 %v786, %v826
    %v828 = vpop.f32.mrf.mxu0
    %v829 = vpop.f32.mrf.mxu0
    %v830 = vadd.f32 %v789, %v829
    %v831 = vpop.f32.mrf.mxu0
    %832 = vdwg.mxu0
    %v833 = vmax.f32 %v827, 0.0
    %v834 = vmax.f32 %v830, 0.0
    %v835 = vpack.c.bf16 %v834, %v833
    %v836 = vld [vmem:[#allocation7] sm:$0xf]
    %v837 = vld [vmem:[#allocation7 + $0x4] sm:$0xf]
    %v838 = vld [vmem:[#allocation7 + $0x8] sm:$0xf]
    %v839 = vld [vmem:[#allocation7 + $0xc] sm:$0xf]
    %v840 = vld [vmem:[#allocation7 + $0x10] sm:$0xf]
    %v841 = vld [vmem:[#allocation7 + $0x14] sm:$0xf]
    %v842 = vld [vmem:[#allocation7 + $0x18] sm:$0xf]
    %v843 = vld [vmem:[#allocation7 + $0x1c] sm:$0xf]
    %v844 = vld [vmem:[#allocation7 + $0x20] sm:$0xf]
    %v845 = vld [vmem:[#allocation7 + $0x24] sm:$0xf]
    %v846 = vld [vmem:[#allocation7 + $0x28] sm:$0xf]
    %v847 = vld [vmem:[#allocation7 + $0x2c] sm:$0xf]
    %v848 = vld [vmem:[#allocation7 + $0x30] sm:$0xf]
    %v849 = vld [vmem:[#allocation7 + $0x34] sm:$0xf]
    %v850 = vld [vmem:[#allocation7 + $0x38] sm:$0xf]
    %v851 = vld [vmem:[#allocation7 + $0x3c] sm:$0xf]
    %v852 = vld [vmem:[%s4] sm:$0x1]
    %v854 = vlaneseq
    %v855 = vshrl.u32 %v854, 7
    %v856 = vsub.s32 0, %v855
    %v857 = vrot.slane %v852, %v856
    %v875 = vunpack.c.l.b16 %v836
    %v876 = vunpack.c.l.b16 %v837
    %v877 = vunpack.c.l.b16 %v838
    %v878 = vunpack.c.l.b16 %v839
    %v879 = vunpack.c.l.b16 %v840
    %v880 = vunpack.c.l.b16 %v841
    %v881 = vunpack.c.l.b16 %v842
    %v882 = vunpack.c.l.b16 %v843
    %v883 = vunpack.c.l.b16 %v844
    %v884 = vunpack.c.l.b16 %v845
    %v885 = vunpack.c.l.b16 %v846
    %v886 = vunpack.c.l.b16 %v847
    %v887 = vunpack.c.l.b16 %v848
    %v888 = vunpack.c.l.b16 %v849
    %v889 = vunpack.c.l.b16 %v850
    %v890 = vunpack.c.l.b16 %v851
    %v891 = vpack.c.b16 %v876, %v875
    %v892 = vpack.c.b16 %v878, %v877
    %v893 = vpack.c.b16 %v880, %v879
    %v894 = vpack.c.b16 %v882, %v881
    %v895 = vpack.c.b16 %v884, %v883
    %v896 = vpack.c.b16 %v886, %v885
    %v897 = vpack.c.b16 %v888, %v887
    %v898 = vpack.c.b16 %v890, %v889
    %907 = vmatprep.subr.bf16.mxu0 0
    %908 = vmatpush1.bf16.msra.mxu0 %v898
    %909 = vmatprep.subr.bf16.mxu0 0
    %910 = vmatpush1.bf16.msra.mxu0 %v897
    %911 = vmatprep.subr.bf16.mxu0 0
    %912 = vmatpush1.bf16.msra.mxu0 %v896
    %913 = vmatprep.subr.bf16.mxu0 0
    %914 = vmatpush1.bf16.msra.mxu0 %v895
    %915 = vmatprep.subr.bf16.mxu0 0
    %916 = vmatpush1.bf16.msra.mxu0 %v894
    %917 = vmatprep.subr.bf16.mxu0 0
    %918 = vmatpush1.bf16.msra.mxu0 %v893
    %919 = vmatprep.subr.bf16.mxu0 0
    %920 = vmatpush1.bf16.msra.mxu0 %v892
    %921 = vmatprep.subr.bf16.mxu0 0
    %922 = vmatpush1.bf16.msra.mxu0 %v891
    %923 = vmatprep.subr.bf16.mxu0 0
    %924 = vmatpush2.bf16.msra.mxu0 0
    %925 = vmatprep.subr.bf16.mxu0 0
    %926 = vmatpush2.bf16.msra.mxu0 0
    %927 = vmatprep.subr.bf16.mxu0 0
    %928 = vmatpush2.bf16.msra.mxu0 0
    %929 = vmatprep.subr.bf16.mxu0 0
    %930 = vmatpush2.bf16.msra.mxu0 0
    %931 = vmatprep.subr.bf16.mxu0 0
    %932 = vmatpush2.bf16.msra.mxu0 0
    %933 = vmatprep.subr.bf16.mxu0 0
    %934 = vmatpush2.bf16.msra.mxu0 0
    %935 = vmatprep.subr.bf16.mxu0 0
    %936 = vmatpush2.bf16.msra.mxu0 0
    %937 = vmatprep.subr.bf16.mxu0 0
    %938 = vmatpush2.bf16.msra.mxu0 0
    %939 = vmatprep.mubr.bf16.mxu0 0
    %940 = vmatmul.mubr.bf16.gmra.mxu0 %v835
    %v941 = vpop.f32.mrf.mxu0
    %v942 = vadd.f32 %v857, %v941
    %v943 = vpop.f32.mrf.mxu0
    %v944 = vpop.f32.mrf.mxu0
    %v945 = vadd.f32 %v857, %v944
    %v946 = vpop.f32.mrf.mxu0
    %947 = vdwg.mxu0
    %v948 = vmax.f32 %v942, 0.0
    %v949 = vmax.f32 %v945, 0.0
    %v950 = vpack.c.bf16 %v949, %v948
    %v951 = vld [vmem:[#allocation8] sm:$0xf]
    %v952 = vld [vmem:[#allocation8 + $0x4] sm:$0xf]
    %v953 = vld [vmem:[#allocation8 + $0x8] sm:$0xf]
    %v954 = vld [vmem:[#allocation8 + $0xc] sm:$0xf]
    %v955 = vld [vmem:[#allocation8 + $0x10] sm:$0xf]
    %v956 = vld [vmem:[#allocation8 + $0x14] sm:$0xf]
    %v957 = vld [vmem:[#allocation8 + $0x18] sm:$0xf]
    %v958 = vld [vmem:[#allocation8 + $0x1c] sm:$0xf]
    %v959 = vld [vmem:[#allocation8 + $0x20] sm:$0xf]
    %v960 = vld [vmem:[#allocation8 + $0x24] sm:$0xf]
    %v961 = vld [vmem:[#allocation8 + $0x28] sm:$0xf]
    %v962 = vld [vmem:[#allocation8 + $0x2c] sm:$0xf]
    %v963 = vld [vmem:[#allocation8 + $0x30] sm:$0xf]
    %v964 = vld [vmem:[#allocation8 + $0x34] sm:$0xf]
    %v965 = vld [vmem:[#allocation8 + $0x38] sm:$0xf]
    %v966 = vld [vmem:[#allocation8 + $0x3c] sm:$0xf]
    %v967 = vld [vmem:[%s6] sm:$0x1]
    %v969 = vlaneseq
    %v970 = vshrl.u32 %v969, 7
    %v971 = vsub.s32 0, %v970
    %v972 = vrot.slane %v967, %v971
    %v990 = vunpack.c.l.b16 %v951
    %v991 = vunpack.c.l.b16 %v952
    %v992 = vunpack.c.l.b16 %v953
    %v993 = vunpack.c.l.b16 %v954
    %v994 = vunpack.c.l.b16 %v955
    %v995 = vunpack.c.l.b16 %v956
    %v996 = vunpack.c.l.b16 %v957
    %v997 = vunpack.c.l.b16 %v958
    %v998 = vunpack.c.l.b16 %v959
    %v999 = vunpack.c.l.b16 %v960
    %v1000 = vunpack.c.l.b16 %v961
    %v1001 = vunpack.c.l.b16 %v962
    %v1002 = vunpack.c.l.b16 %v963
    %v1003 = vunpack.c.l.b16 %v964
    %v1004 = vunpack.c.l.b16 %v965
    %v1005 = vunpack.c.l.b16 %v966
    %v1006 = vpack.c.b16 %v991, %v990
    %v1007 = vpack.c.b16 %v993, %v992
    %v1008 = vpack.c.b16 %v995, %v994
    %v1009 = vpack.c.b16 %v997, %v996
    %v1010 = vpack.c.b16 %v999, %v998
    %v1011 = vpack.c.b16 %v1001, %v1000
    %v1012 = vpack.c.b16 %v1003, %v1002
    %v1013 = vpack.c.b16 %v1005, %v1004
    %1022 = vmatprep.subr.bf16.mxu0 0
    %1023 = vmatpush1.bf16.msra.mxu0 %v1013
    %1024 = vmatprep.subr.bf16.mxu0 0
    %1025 = vmatpush1.bf16.msra.mxu0 %v1012
    %1026 = vmatprep.subr.bf16.mxu0 0
    %1027 = vmatpush1.bf16.msra.mxu0 %v1011
    %1028 = vmatprep.subr.bf16.mxu0 0
    %1029 = vmatpush1.bf16.msra.mxu0 %v1010
    %1030 = vmatprep.subr.bf16.mxu0 0
    %1031 = vmatpush1.bf16.msra.mxu0 %v1009
    %1032 = vmatprep.subr.bf16.mxu0 0
    %1033 = vmatpush1.bf16.msra.mxu0 %v1008
    %1034 = vmatprep.subr.bf16.mxu0 0
    %1035 = vmatpush1.bf16.msra.mxu0 %v1007
    %1036 = vmatprep.subr.bf16.mxu0 0
    %1037 = vmatpush1.bf16.msra.mxu0 %v1006
    %1038 = vmatprep.subr.bf16.mxu0 0
    %1039 = vmatpush2.bf16.msra.mxu0 0
    %1040 = vmatprep.subr.bf16.mxu0 0
    %1041 = vmatpush2.bf16.msra.mxu0 0
    %1042 = vmatprep.subr.bf16.mxu0 0
    %1043 = vmatpush2.bf16.msra.mxu0 0
    %1044 = vmatprep.subr.bf16.mxu0 0
    %1045 = vmatpush2.bf16.msra.mxu0 0
    %1046 = vmatprep.subr.bf16.mxu0 0
    %1047 = vmatpush2.bf16.msra.mxu0 0
    %1048 = vmatprep.subr.bf16.mxu0 0
    %1049 = vmatpush2.bf16.msra.mxu0 0
    %1050 = vmatprep.subr.bf16.mxu0 0
    %1051 = vmatpush2.bf16.msra.mxu0 0
    %1052 = vmatprep.subr.bf16.mxu0 0
    %1053 = vmatpush2.bf16.msra.mxu0 0
    %1054 = vmatprep.mubr.bf16.mxu0 0
    %1055 = vmatmul.mubr.bf16.gmra.mxu0 %v950
    %v1056 = vpop.f32.mrf.mxu0
    %v1057 = vadd.f32 %v972, %v1056
    %v1058 = vpop.f32.mrf.mxu0
    %v1059 = vpop.f32.mrf.mxu0
    %v1060 = vadd.f32 %v972, %v1059
    %v1061 = vpop.f32.mrf.mxu0
    %1062 = vdwg.mxu0
    %v1063 = vmax.f32 %v1057, 0.0
    %v1064 = vmax.f32 %v1060, 0.0
    %v1065 = vpack.c.bf16 %v1064, %v1063
    %v1066 = vld [vmem:[#allocation10] sm:$0xf]
    %v1067 = vld [vmem:[#allocation10 + $0x4] sm:$0xf]
    %v1068 = vld [vmem:[#allocation10 + $0x8] sm:$0xf]
    %v1069 = vld [vmem:[#allocation10 + $0xc] sm:$0xf]
    %v1070 = vld [vmem:[#allocation10 + $0x10] sm:$0xf]
    %v1071 = vld [vmem:[#allocation10 + $0x14] sm:$0xf]
    %v1072 = vld [vmem:[#allocation10 + $0x18] sm:$0xf]
    %v1073 = vld [vmem:[#allocation10 + $0x1c] sm:$0xf]
    %v1074 = vld [vmem:[#allocation10 + $0x20] sm:$0xf]
    %v1075 = vld [vmem:[#allocation10 + $0x24] sm:$0xf]
    %v1076 = vld [vmem:[#allocation10 + $0x28] sm:$0xf]
    %v1077 = vld [vmem:[#allocation10 + $0x2c] sm:$0xf]
    %v1078 = vld [vmem:[#allocation10 + $0x30] sm:$0xf]
    %v1079 = vld [vmem:[#allocation10 + $0x34] sm:$0xf]
    %v1080 = vld [vmem:[#allocation10 + $0x38] sm:$0xf]
    %v1081 = vld [vmem:[#allocation10 + $0x3c] sm:$0xf]
    %v1082 = vld [vmem:[%s8] sm:$0x1]
    %v1084 = vlaneseq
    %v1085 = vshrl.u32 %v1084, 7
    %v1086 = vsub.s32 0, %v1085
    %v1087 = vrot.slane %v1082, %v1086
    %v1105 = vunpack.c.l.b16 %v1066
    %v1106 = vunpack.c.l.b16 %v1067
    %v1107 = vunpack.c.l.b16 %v1068
    %v1108 = vunpack.c.l.b16 %v1069
    %v1109 = vunpack.c.l.b16 %v1070
    %v1110 = vunpack.c.l.b16 %v1071
    %v1111 = vunpack.c.l.b16 %v1072
    %v1112 = vunpack.c.l.b16 %v1073
    %v1113 = vunpack.c.l.b16 %v1074
    %v1114 = vunpack.c.l.b16 %v1075
    %v1115 = vunpack.c.l.b16 %v1076
    %v1116 = vunpack.c.l.b16 %v1077
    %v1117 = vunpack.c.l.b16 %v1078
    %v1118 = vunpack.c.l.b16 %v1079
    %v1119 = vunpack.c.l.b16 %v1080
    %v1120 = vunpack.c.l.b16 %v1081
    %v1121 = vpack.c.b16 %v1106, %v1105
    %v1122 = vpack.c.b16 %v1108, %v1107
    %v1123 = vpack.c.b16 %v1110, %v1109
    %v1124 = vpack.c.b16 %v1112, %v1111
    %v1125 = vpack.c.b16 %v1114, %v1113
    %v1126 = vpack.c.b16 %v1116, %v1115
    %v1127 = vpack.c.b16 %v1118, %v1117
    %v1128 = vpack.c.b16 %v1120, %v1119
    %1137 = vmatprep.subr.bf16.mxu0 0
    %1138 = vmatpush1.bf16.msra.mxu0 %v1128
    %1139 = vmatprep.subr.bf16.mxu0 0
    %1140 = vmatpush1.bf16.msra.mxu0 %v1127
    %1141 = vmatprep.subr.bf16.mxu0 0
    %1142 = vmatpush1.bf16.msra.mxu0 %v1126
    %1143 = vmatprep.subr.bf16.mxu0 0
    %1144 = vmatpush1.bf16.msra.mxu0 %v1125
    %1145 = vmatprep.subr.bf16.mxu0 0
    %1146 = vmatpush1.bf16.msra.mxu0 %v1124
    %1147 = vmatprep.subr.bf16.mxu0 0
    %1148 = vmatpush1.bf16.msra.mxu0 %v1123
    %1149 = vmatprep.subr.bf16.mxu0 0
    %1150 = vmatpush1.bf16.msra.mxu0 %v1122
    %1151 = vmatprep.subr.bf16.mxu0 0
    %1152 = vmatpush1.bf16.msra.mxu0 %v1121
    %1153 = vmatprep.subr.bf16.mxu0 0
    %1154 = vmatpush2.bf16.msra.mxu0 0
    %1155 = vmatprep.subr.bf16.mxu0 0
    %1156 = vmatpush2.bf16.msra.mxu0 0
    %1157 = vmatprep.subr.bf16.mxu0 0
    %1158 = vmatpush2.bf16.msra.mxu0 0
    %1159 = vmatprep.subr.bf16.mxu0 0
    %1160 = vmatpush2.bf16.msra.mxu0 0
    %1161 = vmatprep.subr.bf16.mxu0 0
    %1162 = vmatpush2.bf16.msra.mxu0 0
    %1163 = vmatprep.subr.bf16.mxu0 0
    %1164 = vmatpush2.bf16.msra.mxu0 0
    %1165 = vmatprep.subr.bf16.mxu0 0
    %1166 = vmatpush2.bf16.msra.mxu0 0
    %1167 = vmatprep.subr.bf16.mxu0 0
    %1168 = vmatpush2.bf16.msra.mxu0 0
    %1169 = vmatprep.mubr.bf16.mxu0 0
    %1170 = vmatmul.mubr.bf16.gmra.mxu0 %v1065
    %v1171 = vpop.f32.mrf.mxu0
    %v1172 = vadd.f32 %v1087, %v1171
    %v1173 = vpop.f32.mrf.mxu0
    %v1174 = vpop.f32.mrf.mxu0
    %v1175 = vadd.f32 %v1087, %v1174
    %v1176 = vpop.f32.mrf.mxu0
    %1177 = vdwg.mxu0
    %v1178 = vpack.c.bf16 %v1175, %v1172
    %v1180 = vunpack.c.l.b16 %v1178
    %v1181 = vunpack.c.h.b16 %v1178
    %v1182 = vpack.c.b16 %v1180, %v1180
    %v1183 = vpack.c.b16 %v1181, %v1181
    %1186 = vst [vmem:[#allocation11] sm:$0xf] %v1182
    %1187 = vst [vmem:[#allocation11 + $0x4] sm:$0xf] %v1183
    // Predicated region
    $region58: #{tpu_custom_call.1} parent=1 // pred_check
      _
    $region59: #{tpu_custom_call.1} parent=1 // pred_check_branch
      %1189 = sbr.rel (0) target = $region61
    $region60: #{tpu_custom_call.1} parent=1 // pred_region
      %s1191 = ssub.s32 128, 128
      %1192 = vsyncadd [#allocation4], %s1191
      %s1193 = sshll.u32 [#allocation11], 4
      %s1194 = int_to_ptr.vmem [resolvable:$true] %s1193
      %1199 = dma.vmem_to_hbm [thread:$0]  %s1194, 128, %s9, [#allocation4], 64, 64, 4
    $region61: #{tpu_custom_call.1} parent=1 // pred_fallthru
      _
    // Predicated region
    $region62: #{tpu_custom_call.1} parent=1 // pred_check
      _
    $region63: #{tpu_custom_call.1} parent=1 // pred_check_branch
      %1201 = sbr.rel (0) target = $region65
    $region64: #{tpu_custom_call.1} parent=1 // pred_region
      %1202 = dma.done [#allocation4], 128
    $region65: #{tpu_custom_call.1} parent=1 // pred_fallthru
      _
    %1203 = vsyncpa [#allocation3], 1
    %1204 = vsyncpa [#allocation6], 1
    %1205 = vsyncpa [#allocation9], 1
    %1206 = vsyncpa [#allocation4], 1

</llo_original>
